<compile_context>
chip_gen: v6e
topology: v6e:2x2x1
jax: 0.10.0
libtpu: 0.0.40
codegen_flags: <defaults>
</compile_context>

<pallas_src>
import jax
import jax.numpy as jnp
from jax import lax
from jax.experimental import pallas as pl
from jax.experimental.pallas import tpu as pltpu


# ---------------------------------------------------------------------------
# Pallas kernel: one (TM, TM) tile of adj = Z @ Z^T
# ---------------------------------------------------------------------------
def _inner_product_kernel(zr_ref, zc_ref, o_ref):
    # zr_ref: (TM, F) row tile of Z;  zc_ref: (TM, F) column tile of Z;  o_ref: (TM, TM)
    # Contract over the last axis of both operands: adj_tile = Zr @ Zc^T without
    # materializing a transpose inside the kernel (MXU takes the NT form directly).
    o_ref[...] = lax.dot_general(
        zr_ref[...],
        zc_ref[...],
        dimension_numbers=(((1,), (1,)), ((), ())),
        preferred_element_type=jnp.float32,
    ).astype(o_ref.dtype)


def _round_up(x, m):
    return ((x + m - 1) // m) * m


def inner_product_decode(z, *, tile=256):
    """adj = z @ z.T   (InnerProductDecoder with dropout=0 and identity activation)."""
    n, f = z.shape

    # Lane-dense tiling: clamp the tile to the 128-rounded node count (don't over-inflate
    # for tiny graphs), then zero-pad N so the tile divides it exactly.  Zero rows contribute
    # zero dot products, so padding is exact; the result is sliced back to (n, n).
    tm = min(tile, _round_up(n, 128))
    n_pad = _round_up(n, tm)
    if n_pad != n:
        z = jnp.pad(z, ((0, n_pad - n), (0, 0)))

    grid = (n_pad // tm, n_pad // tm)
    cost = pl.CostEstimate(
        flops=2 * n_pad * n_pad * f,
        transcendentals=0,
        bytes_accessed=(2 * n_pad * f + n_pad * n_pad) * z.dtype.itemsize,
    )

    adj = pl.pallas_call(
        _inner_product_kernel,
        out_shape=jax.ShapeDtypeStruct((n_pad, n_pad), z.dtype),
        grid_spec=pltpu.PrefetchScalarGridSpec(
            num_scalar_prefetch=0,
            grid=grid,
            in_specs=[
                pl.BlockSpec((tm, f), lambda i, j: (i, 0)),  # row tile of Z
                pl.BlockSpec((tm, f), lambda i, j: (j, 0)),  # column tile of Z
            ],
            out_specs=pl.BlockSpec((tm, tm), lambda i, j: (i, j)),
        ),
        compiler_params=pltpu.CompilerParams(
            dimension_semantics=("parallel", "parallel"),
        ),
        cost_estimate=cost,
    )(z, z)

    if n_pad != n:
        adj = adj[:n, :n]
    return adj


# ---------------------------------------------------------------------------
# Graph_DIF forward (JAX glue around the Pallas decoder kernel)
# ---------------------------------------------------------------------------
def graph_dif_forward(node_features, edge_index):
    # TODO(synk): the GND diffusion sub-module is not defined in the provided source;
    # it is treated as an identity pass-through (out_nodes_features = input features,
    # last_embedding = input features), matching the data flow of the given forward().
    out_nodes_features = node_features
    last_embedding = node_features

    # InnerProductDecoder with dropout=0 and act = identity  ->  Z @ Z^T on the MXU.
    recon_adj = inner_product_decode(out_nodes_features)

    return out_nodes_features, recon_adj, last_embedding


# ---------------------------------------------------------------------------
if __name__ == "__main__":
    key = jax.random.PRNGKey(0)
    k_feat, k_edge = jax.random.split(key)

    # Small graph; node count deliberately NOT a multiple of 128 to exercise the
    # padding / lane-dense-tile path.  32 diffusion features, 256 edges.
    num_nodes = 120
    num_features_diffusion = 32
    num_edges = 256

    node_features = jax.random.normal(
        k_feat, (num_nodes, num_features_diffusion), dtype=jnp.float32
    )
    edge_index = jax.random.randint(
        k_edge, (2, num_edges), 0, num_nodes, dtype=jnp.int32
    )

    out_nodes_features, recon_adj, last_embedding = graph_dif_forward(
        node_features, edge_index
    )
    jax.block_until_ready((out_nodes_features, recon_adj, last_embedding))

    # Sanity check against plain-JAX reference of the decoder hot path.
    ref = node_features @ node_features.T
    assert recon_adj.shape == (num_nodes, num_nodes)
    assert out_nodes_features.shape == (num_nodes, num_features_diffusion)
    assert last_embedding.shape == (num_nodes, num_features_diffusion)
    assert jnp.max(jnp.abs(recon_adj - ref)) < 1e-4

    print("KERNEL_OK")
</pallas_src>

<mosaic_0001>
module attributes {stable_mosaic.version = 11 : i64} {
  func.func @_inner_product_kernel(%arg0: i32, %arg1: i32, %arg2: memref<128x32xf32, #tpu.memory_space<vmem>>, %arg3: memref<128x32xf32, #tpu.memory_space<vmem>>, %arg4: memref<128x128xf32, #tpu.memory_space<vmem>>) attributes {dimension_semantics = [#tpu.dimension_semantics<parallel>, #tpu.dimension_semantics<parallel>], iteration_bounds = array<i64: 1, 1>, scalar_prefetch = 0 : i64, scratch_operands = 0 : i64, tpu.core_type = #tpu.core_type<tc>, window_params = [{transform_indices = @transform_0, window_bounds = array<i64: 128, 32>}, {transform_indices = @transform_1, window_bounds = array<i64: 128, 32>}, {transform_indices = @transform_2, window_bounds = array<i64: 128, 128>}]} {
    %c0 = arith.constant 0 : index
    %c0_0 = arith.constant 0 : index
    %0 = vector.load %arg2[%c0, %c0_0] : memref<128x32xf32, #tpu.memory_space<vmem>>, vector<128x32xf32>
    %c0_1 = arith.constant 0 : index
    %c0_2 = arith.constant 0 : index
    %1 = vector.load %arg3[%c0_1, %c0_2] : memref<128x32xf32, #tpu.memory_space<vmem>>, vector<128x32xf32>
    %cst = arith.constant dense<0.000000e+00> : vector<128x128xf32>
    %2 = tpu.matmul %0, %1, %cst {dimension_numbers = #tpu.dot_dimension_numbers<[1], [1], [0], [0], [0, 0, 1, 0], [], []>} : vector<128x32xf32>, vector<128x32xf32>, vector<128x128xf32> -> vector<128x128xf32>
    %c0_3 = arith.constant 0 : index
    %c0_4 = arith.constant 0 : index
    %3 = vector.load %arg4[%c0_3, %c0_4] : memref<128x128xf32, #tpu.memory_space<vmem>>, vector<128x128xf32>
    tpu.vector_store %arg4[%c0_3, %c0_4], %2 {strides = array<i32>} : memref<128x128xf32, #tpu.memory_space<vmem>>, vector<128x128xf32>,
    return
  }
  func.func @transform_0(%arg0: i32, %arg1: i32) -> (i32, i32) {
    %c0_i32 = arith.constant 0 : i32
    %c0_i32_0 = arith.constant 0 : i32
    return %arg0, %c0_i32 : i32, i32
  }
  func.func @transform_1(%arg0: i32, %arg1: i32) -> (i32, i32) {
    %c0_i32 = arith.constant 0 : i32
    %c0_i32_0 = arith.constant 0 : i32
    return %arg1, %c0_i32 : i32, i32
  }
  func.func @transform_2(%arg0: i32, %arg1: i32) -> (i32, i32) {
    %c0_i32 = arith.constant 0 : i32
    return %arg0, %arg1 : i32, i32
  }
}

</mosaic_0001>

<llo_original>
// kernel: tpu_custom_call.1
$region0: #{tpu_custom_call.1}
  #allocation0 [shape = 'u32[]', space=smem, size = 0x4, offset = 0x4, fixed_abs, tag = 'smem constant byte address 0x4 - core index']
  #allocation1 [shape = 'u32[144,128]{1,0:T(1,128)}', space=vmem, size = 0x12000, scoped, tag = 'internal scratch']
  %s0 = inlined_call_operand.vmem [shape: f32[128,32], index: 0, kind: input, shape index: {}]
  %s1 = inlined_call_operand.vmem [shape: f32[128,32], index: 1, kind: input, shape index: {}]
  %s2 = inlined_call_operand.hbm [shape: f32[128,128], index: 2, kind: output, shape index: {}]
  %s3 = sld [smem:[#allocation0]]
  $region18: #{tpu_custom_call.1} parent=0
    _
  %s5 = ssub.s32 1, %s3
  %s6 = scalar_select 0, %s5, %s3
  $region1: #{tpu_custom_call.1} parent=0
    #allocation2 [shape = 'u8[65536]{0}', space=vmem, size = 0x10000, scoped, tag = 'output window, operand 0, single buffered']
    #allocation3 [shape = 's32[1]{0}', space=sflag, size = 0x4, scoped, tag = 'scoped memory for tpu_custom_call.1']
    %7 = vsyncpa [#allocation3], 0
    // Predicated region
    $region2: #{tpu_custom_call.1} parent=1 // pred_check
      _
    $region3: #{tpu_custom_call.1} parent=1 // pred_check_branch
      %9 = sbr.rel (0) target = $region5
    $region4: #{tpu_custom_call.1} parent=1 // pred_region
      _
    $region5: #{tpu_custom_call.1} parent=1 // pred_fallthru
      _
    // Predicated region
    $region6: #{tpu_custom_call.1} parent=1 // pred_check
      _
    $region7: #{tpu_custom_call.1} parent=1 // pred_check_branch
      %11 = sbr.rel (0) target = $region9
    $region8: #{tpu_custom_call.1} parent=1 // pred_region
      _
    $region9: #{tpu_custom_call.1} parent=1 // pred_fallthru
      _
    %v12 = vld [vmem:[%s0] sm:$0xff]
    %v13 = vld [vmem:[%s0 + $0x8] sm:$0xff]
    %v14 = vld [vmem:[%s0 + $0x10] sm:$0xff]
    %v15 = vld [vmem:[%s0 + $0x18] sm:$0xff]
    %v16 = vld [vmem:[%s0 + $0x20] sm:$0xff]
    %v17 = vld [vmem:[%s0 + $0x28] sm:$0xff]
    %v18 = vld [vmem:[%s0 + $0x30] sm:$0xff]
    %v19 = vld [vmem:[%s0 + $0x38] sm:$0xff]
    %v20 = vld [vmem:[%s0 + $0x40] sm:$0xff]
    %v21 = vld [vmem:[%s0 + $0x48] sm:$0xff]
    %v22 = vld [vmem:[%s0 + $0x50] sm:$0xff]
    %v23 = vld [vmem:[%s0 + $0x58] sm:$0xff]
    %v24 = vld [vmem:[%s0 + $0x60] sm:$0xff]
    %v25 = vld [vmem:[%s0 + $0x68] sm:$0xff]
    %v26 = vld [vmem:[%s0 + $0x70] sm:$0xff]
    %v27 = vld [vmem:[%s0 + $0x78] sm:$0xff]
    %v28 = vld [vmem:[%s1] sm:$0xff]
    %v29 = vld [vmem:[%s1 + $0x8] sm:$0xff]
    %v30 = vld [vmem:[%s1 + $0x10] sm:$0xff]
    %v31 = vld [vmem:[%s1 + $0x18] sm:$0xff]
    %v32 = vld [vmem:[%s1 + $0x20] sm:$0xff]
    %v33 = vld [vmem:[%s1 + $0x28] sm:$0xff]
    %v34 = vld [vmem:[%s1 + $0x30] sm:$0xff]
    %v35 = vld [vmem:[%s1 + $0x38] sm:$0xff]
    %v36 = vld [vmem:[%s1 + $0x40] sm:$0xff]
    %v37 = vld [vmem:[%s1 + $0x48] sm:$0xff]
    %v38 = vld [vmem:[%s1 + $0x50] sm:$0xff]
    %v39 = vld [vmem:[%s1 + $0x58] sm:$0xff]
    %v40 = vld [vmem:[%s1 + $0x60] sm:$0xff]
    %v41 = vld [vmem:[%s1 + $0x68] sm:$0xff]
    %v42 = vld [vmem:[%s1 + $0x70] sm:$0xff]
    %v43 = vld [vmem:[%s1 + $0x78] sm:$0xff]
    %vm44 = vcmask 261120
    %v46 = vsel %vm44, %v12, 0
    %v49 = vsel %vm44, %v13, 0
    %v52 = vsel %vm44, %v14, 0
    %v55 = vsel %vm44, %v15, 0
    %v58 = vsel %vm44, %v16, 0
    %v61 = vsel %vm44, %v17, 0
    %v64 = vsel %vm44, %v18, 0
    %v67 = vsel %vm44, %v19, 0
    %v70 = vsel %vm44, %v20, 0
    %v73 = vsel %vm44, %v21, 0
    %v76 = vsel %vm44, %v22, 0
    %v79 = vsel %vm44, %v23, 0
    %v82 = vsel %vm44, %v24, 0
    %v85 = vsel %vm44, %v25, 0
    %v88 = vsel %vm44, %v26, 0
    %v91 = vsel %vm44, %v27, 0
    %v94 = vsel %vm44, %v28, 0
    %v97 = vsel %vm44, %v29, 0
    %v100 = vsel %vm44, %v30, 0
    %v103 = vsel %vm44, %v31, 0
    %v106 = vsel %vm44, %v32, 0
    %v109 = vsel %vm44, %v33, 0
    %v112 = vsel %vm44, %v34, 0
    %v115 = vsel %vm44, %v35, 0
    %v118 = vsel %vm44, %v36, 0
    %v121 = vsel %vm44, %v37, 0
    %v124 = vsel %vm44, %v38, 0
    %v127 = vsel %vm44, %v39, 0
    %v130 = vsel %vm44, %v40, 0
    %v133 = vsel %vm44, %v41, 0
    %v136 = vsel %vm44, %v42, 0
    %v139 = vsel %vm44, %v43, 0
    %141 = vmatprep.subr.mxu0 0.0
    %142 = vmatpush1.xpose.msra.mxu0 %v139
    %143 = vmatprep.subr.mxu0 0.0
    %144 = vmatpush1.xpose.msra.mxu0 %v136
    %145 = vmatprep.subr.mxu0 0.0
    %146 = vmatpush1.xpose.msra.mxu0 %v133
    %147 = vmatprep.subr.mxu0 0.0
    %148 = vmatpush1.xpose.msra.mxu0 %v130
    %149 = vmatprep.subr.mxu0 0.0
    %150 = vmatpush1.xpose.msra.mxu0 %v127
    %151 = vmatprep.subr.mxu0 0.0
    %152 = vmatpush1.xpose.msra.mxu0 %v124
    %153 = vmatprep.subr.mxu0 0.0
    %154 = vmatpush1.xpose.msra.mxu0 %v121
    %155 = vmatprep.subr.mxu0 0.0
    %156 = vmatpush1.xpose.msra.mxu0 %v118
    %157 = vmatprep.subr.mxu0 0.0
    %158 = vmatpush1.xpose.msra.mxu0 %v115
    %159 = vmatprep.subr.mxu0 0.0
    %160 = vmatpush1.xpose.msra.mxu0 %v112
    %161 = vmatprep.subr.mxu0 0.0
    %162 = vmatpush1.xpose.msra.mxu0 %v109
    %163 = vmatprep.subr.mxu0 0.0
    %164 = vmatpush1.xpose.msra.mxu0 %v106
    %165 = vmatprep.subr.mxu0 0.0
    %166 = vmatpush1.xpose.msra.mxu0 %v103
    %167 = vmatprep.subr.mxu0 0.0
    %168 = vmatpush1.xpose.msra.mxu0 %v100
    %169 = vmatprep.subr.mxu0 0.0
    %170 = vmatpush1.xpose.msra.mxu0 %v97
    %171 = vmatprep.subr.mxu0 0.0
    %172 = vmatpush1.xpose.msra.mxu0 %v94
    %173 = vmatprep.subr.mxu0 0.0
    %174 = vmatpush2.xpose.msra.mxu0 0.0
    %175 = vmatprep.subr.mxu0 0.0
    %176 = vmatpush2.xpose.msra.mxu0 0.0
    %177 = vmatprep.subr.mxu0 0.0
    %178 = vmatpush2.xpose.msra.mxu0 0.0
    %179 = vmatprep.subr.mxu0 0.0
    %180 = vmatpush2.xpose.msra.mxu0 0.0
    %181 = vmatprep.subr.mxu0 0.0
    %182 = vmatpush2.xpose.msra.mxu0 0.0
    %183 = vmatprep.subr.mxu0 0.0
    %184 = vmatpush2.xpose.msra.mxu0 0.0
    %185 = vmatprep.subr.mxu0 0.0
    %186 = vmatpush2.xpose.msra.mxu0 0.0
    %187 = vmatprep.subr.mxu0 0.0
    %188 = vmatpush2.xpose.msra.mxu0 0.0
    %189 = vmatprep.subr.mxu0 0.0
    %190 = vmatpush2.xpose.msra.mxu0 0.0
    %191 = vmatprep.subr.mxu0 0.0
    %192 = vmatpush2.xpose.msra.mxu0 0.0
    %193 = vmatprep.subr.mxu0 0.0
    %194 = vmatpush2.xpose.msra.mxu0 0.0
    %195 = vmatprep.subr.mxu0 0.0
    %196 = vmatpush2.xpose.msra.mxu0 0.0
    %197 = vmatprep.subr.mxu0 0.0
    %198 = vmatpush2.xpose.msra.mxu0 0.0
    %199 = vmatprep.subr.mxu0 0.0
    %200 = vmatpush2.xpose.msra.mxu0 0.0
    %201 = vmatprep.subr.mxu0 0.0
    %202 = vmatpush2.xpose.msra.mxu0 0.0
    %203 = vmatprep.subr.mxu0 0.0
    %204 = vmatpush2.xpose.msra.mxu0 0.0
    %205 = vmatprep.mubr.f32.mxu0 0.0
    %206 = vmatmul.mubr.f32.gmra.mxu0 %v46
    %v207 = vpop.f32.mrf.mxu0
    %v208 = vadd.f32 0.0, %v207
    %v209 = vpop.f32.mrf.mxu0
    %210 = vmatprep.mubr.f32.mxu0 0.0
    %211 = vmatmul.mubr.f32.gmra.mxu0 %v49
    %v212 = vpop.f32.mrf.mxu0
    %v213 = vadd.f32 0.0, %v212
    %v214 = vpop.f32.mrf.mxu0
    %215 = vmatprep.mubr.f32.mxu0 0.0
    %216 = vmatmul.mubr.f32.gmra.mxu0 %v52
    %v217 = vpop.f32.mrf.mxu0
    %v218 = vadd.f32 0.0, %v217
    %v219 = vpop.f32.mrf.mxu0
    %220 = vmatprep.mubr.f32.mxu0 0.0
    %221 = vmatmul.mubr.f32.gmra.mxu0 %v55
    %v222 = vpop.f32.mrf.mxu0
    %v223 = vadd.f32 0.0, %v222
    %v224 = vpop.f32.mrf.mxu0
    %225 = vmatprep.mubr.f32.mxu0 0.0
    %226 = vmatmul.mubr.f32.gmra.mxu0 %v58
    %v227 = vpop.f32.mrf.mxu0
    %v228 = vadd.f32 0.0, %v227
    %v229 = vpop.f32.mrf.mxu0
    %230 = vmatprep.mubr.f32.mxu0 0.0
    %231 = vmatmul.mubr.f32.gmra.mxu0 %v61
    %v232 = vpop.f32.mrf.mxu0
    %v233 = vadd.f32 0.0, %v232
    %v234 = vpop.f32.mrf.mxu0
    %235 = vmatprep.mubr.f32.mxu0 0.0
    %236 = vmatmul.mubr.f32.gmra.mxu0 %v64
    %v237 = vpop.f32.mrf.mxu0
    %v238 = vadd.f32 0.0, %v237
    %v239 = vpop.f32.mrf.mxu0
    %240 = vmatprep.mubr.f32.mxu0 0.0
    %241 = vmatmul.mubr.f32.gmra.mxu0 %v67
    %v242 = vpop.f32.mrf.mxu0
    %v243 = vadd.f32 0.0, %v242
    %v244 = vpop.f32.mrf.mxu0
    %245 = vmatprep.mubr.f32.mxu0 0.0
    %246 = vmatmul.mubr.f32.gmra.mxu0 %v70
    %v247 = vpop.f32.mrf.mxu0
    %v248 = vadd.f32 0.0, %v247
    %v249 = vpop.f32.mrf.mxu0
    %250 = vmatprep.mubr.f32.mxu0 0.0
    %251 = vmatmul.mubr.f32.gmra.mxu0 %v73
    %v252 = vpop.f32.mrf.mxu0
    %v253 = vadd.f32 0.0, %v252
    %v254 = vpop.f32.mrf.mxu0
    %255 = vmatprep.mubr.f32.mxu0 0.0
    %256 = vmatmul.mubr.f32.gmra.mxu0 %v76
    %v257 = vpop.f32.mrf.mxu0
    %v258 = vadd.f32 0.0, %v257
    %v259 = vpop.f32.mrf.mxu0
    %260 = vmatprep.mubr.f32.mxu0 0.0
    %261 = vmatmul.mubr.f32.gmra.mxu0 %v79
    %v262 = vpop.f32.mrf.mxu0
    %v263 = vadd.f32 0.0, %v262
    %v264 = vpop.f32.mrf.mxu0
    %265 = vmatprep.mubr.f32.mxu0 0.0
    %266 = vmatmul.mubr.f32.gmra.mxu0 %v82
    %v267 = vpop.f32.mrf.mxu0
    %v268 = vadd.f32 0.0, %v267
    %v269 = vpop.f32.mrf.mxu0
    %270 = vmatprep.mubr.f32.mxu0 0.0
    %271 = vmatmul.mubr.f32.gmra.mxu0 %v85
    %v272 = vpop.f32.mrf.mxu0
    %v273 = vadd.f32 0.0, %v272
    %v274 = vpop.f32.mrf.mxu0
    %275 = vmatprep.mubr.f32.mxu0 0.0
    %276 = vmatmul.mubr.f32.gmra.mxu0 %v88
    %v277 = vpop.f32.mrf.mxu0
    %v278 = vadd.f32 0.0, %v277
    %v279 = vpop.f32.mrf.mxu0
    %280 = vmatprep.mubr.f32.mxu0 0.0
    %281 = vmatmul.mubr.f32.gmra.mxu0 %v91
    %v282 = vpop.f32.mrf.mxu0
    %v283 = vadd.f32 0.0, %v282
    %v284 = vpop.f32.mrf.mxu0
    %285 = vdwg.mxu0
    %286 = vst [vmem:[#allocation2] sm:$0xff] %v208
    %287 = vst [vmem:[#allocation2 + $0x8] sm:$0xff] %v213
    %288 = vst [vmem:[#allocation2 + $0x10] sm:$0xff] %v218
    %289 = vst [vmem:[#allocation2 + $0x18] sm:$0xff] %v223
    %290 = vst [vmem:[#allocation2 + $0x20] sm:$0xff] %v228
    %291 = vst [vmem:[#allocation2 + $0x28] sm:$0xff] %v233
    %292 = vst [vmem:[#allocation2 + $0x30] sm:$0xff] %v238
    %293 = vst [vmem:[#allocation2 + $0x38] sm:$0xff] %v243
    %294 = vst [vmem:[#allocation2 + $0x40] sm:$0xff] %v248
    %295 = vst [vmem:[#allocation2 + $0x48] sm:$0xff] %v253
    %296 = vst [vmem:[#allocation2 + $0x50] sm:$0xff] %v258
    %297 = vst [vmem:[#allocation2 + $0x58] sm:$0xff] %v263
    %298 = vst [vmem:[#allocation2 + $0x60] sm:$0xff] %v268
    %299 = vst [vmem:[#allocation2 + $0x68] sm:$0xff] %v273
    %300 = vst [vmem:[#allocation2 + $0x70] sm:$0xff] %v278
    %301 = vst [vmem:[#allocation2 + $0x78] sm:$0xff] %v283
    // Predicated region
    $region10: #{tpu_custom_call.1} parent=1 // pred_check
      _
    $region11: #{tpu_custom_call.1} parent=1 // pred_check_branch
      %303 = sbr.rel (0) target = $region13
    $region12: #{tpu_custom_call.1} parent=1 // pred_region
      %s305 = ssub.s32 2048, 2048
      %306 = vsyncadd [#allocation3], %s305
      %s307 = sshll.u32 [#allocation2], 4
      %s308 = int_to_ptr.vmem [resolvable:$true] %s307
      %313 = dma.vmem_to_hbm [thread:$0]  %s308, 2048, %s2, [#allocation3], 128, 128, 8
    $region13: #{tpu_custom_call.1} parent=1 // pred_fallthru
      _
    // Predicated region
    $region14: #{tpu_custom_call.1} parent=1 // pred_check
      _
    $region15: #{tpu_custom_call.1} parent=1 // pred_check_branch
      %315 = sbr.rel (0) target = $region17
    $region16: #{tpu_custom_call.1} parent=1 // pred_region
      %316 = dma.done [#allocation3], 2048
    $region17: #{tpu_custom_call.1} parent=1 // pred_fallthru
      _
    %317 = vsyncpa [#allocation3], 1

</llo_original>
